<compile_context>
chip_gen: v5e
topology: v5e:2x2
jax: 0.10.0
libtpu: 0.0.40
codegen_flags: <defaults>
</compile_context>

<pallas_src>
import math

import jax
import jax.numpy as jnp
from jax.experimental import pallas as pl
from jax.experimental.pallas import tpu as pltpu

_LANE = 128
_SUBLANE = 8
_TWO_PASS_VMEM_LIMIT = 32 * 1024 * 1024
_FUSED_VMEM_LIMIT = 40 * 1024 * 1024
# Fused path gate: per-batch C*HW element count (<= 4 MiB of f32-equivalent data,
# safe for double-buffered in+out plus f32 intermediates on v5e/v6e/v7x).
_FUSED_MAX_ELEMS = 1 << 20
_TILE_TARGET_BYTES = 2 * 1024 * 1024  # ~2 MiB streamed tiles (HBM-roofline sweet spot)


def _round_up(a, m):
    return ((a + m - 1) // m) * m


def _pick_tiles(C, HW, itemsize):
    """Channel (sublane) tile and HW (lane) tile for the streaming two-pass path."""
    TC = C if C <= 256 else 256                       # 256 is a multiple of 8 (and 16)
    thw = (_TILE_TARGET_BYTES // (TC * itemsize) // _LANE) * _LANE
    thw = max(_LANE, thw)
    if HW <= thw:
        return TC, HW                                  # single full-width block (exempt)
    return TC, thw                                     # multiple of 128; last tile partial


# ---------------------------------------------------------------------------
# Fused single-pass kernel: pool + conv1d + sigmoid + rescale, grid over B.
# ---------------------------------------------------------------------------
def _make_fused_kernel(C, HW, K, pad):
    inv_hw = 1.0 / float(HW)

    def kernel(w_ref, x_ref, o_ref, mpad_ref):
        # w_ref   : SMEM (K,) f32 conv taps
        # x_ref   : VMEM (1, C, HW) input slice for one batch element
        # o_ref   : VMEM (1, C, HW) output slice
        # mpad_ref: VMEM (round_up(C + 2*pad, 8), 1) f32 zero-padded channel means
        xf = x_ref[0].astype(jnp.float32)                        # (C, HW)
        means = jnp.sum(xf, axis=-1, keepdims=True) * inv_hw     # (C, 1) f32

        # k-tap cross-correlation over channels with zero padding (PyTorch Conv1d).
        mpad_ref[...] = jnp.zeros_like(mpad_ref)
        mpad_ref[pad:pad + C, :] = means
        y = w_ref[0] * mpad_ref[0:C, :]
        for t in range(1, K):
            y = y + w_ref[t] * mpad_ref[t:t + C, :]

        scale = 1.0 / (1.0 + jnp.exp(-y))                        # sigmoid, f32 (C, 1)
        o_ref[0] = (xf * scale).astype(o_ref.dtype)

    return kernel


# ---------------------------------------------------------------------------
# Two-pass streaming path (large activations that do not fit VMEM per batch).
# ---------------------------------------------------------------------------
def _make_pool_kernel(HW, THW, n_i):
    needs_mask = (HW % THW) != 0

    def kernel(x_ref, psum_ref):
        # x_ref    : VMEM (1, TC, THW) input tile
        # psum_ref : VMEM (1, 1, TC, 1) f32 running sum, resident across inner HW axis
        @pl.when(pl.program_id(3) == 0)
        def _():
            psum_ref[...] = jnp.zeros_like(psum_ref)

        xf = x_ref[...].astype(jnp.float32)                      # (1, TC, THW)
        if needs_mask:
            hw_block = pl.program_id(2) * n_i + pl.program_id(3)
            lane = jax.lax.broadcasted_iota(jnp.int32, xf.shape, 2)
            xf = jnp.where(lane + hw_block * THW < HW, xf, 0.0)  # zero out OOB lanes
        psum_ref[0, 0] = psum_ref[0, 0] + jnp.sum(xf[0], axis=-1, keepdims=True)

    return kernel


def _scale_kernel(s_ref, x_ref, o_ref):
    """Streaming channel rescale: o = x * s, multiply in f32, cast on store."""
    o_ref[...] = (x_ref[...].astype(jnp.float32) * s_ref[...]).astype(o_ref.dtype)


# ---------------------------------------------------------------------------
# Wrapper
# ---------------------------------------------------------------------------
def eca_forward(x, weight, *, force_two_pass=False):
    """x: (B, C, H, W) (NCHW, like PyTorch).  weight: (K,) conv1d taps."""
    B, C, H, W = x.shape
    HW = H * W
    K = int(weight.shape[0])
    pad = K // 2
    w32 = weight.astype(jnp.float32)
    x3 = x.reshape(B, C, HW)                       # contiguous merge of minor dims: free

    # ---- fused single-pass path (1 read + 1 write of x) ---------------------
    if (C * HW <= _FUSED_MAX_ELEMS) and not force_two_pass:
        scratch_rows = _round_up(C + 2 * pad, _SUBLANE)
        out = pl.pallas_call(
            _make_fused_kernel(C, HW, K, pad),
            out_shape=jax.ShapeDtypeStruct((B, C, HW), x.dtype),
            grid_spec=pltpu.PrefetchScalarGridSpec(
                num_scalar_prefetch=0,
                grid=(B,),
                in_specs=[
                    pl.BlockSpec(memory_space=pltpu.MemorySpace.SMEM),   # conv taps
                    pl.BlockSpec((1, C, HW), lambda bb: (bb, 0, 0)),     # x slice
                ],
                out_specs=pl.BlockSpec((1, C, HW), lambda bb: (bb, 0, 0)),
                scratch_shapes=[pltpu.VMEM((scratch_rows, 1), jnp.float32)],
            ),
            compiler_params=pltpu.CompilerParams(
                dimension_semantics=("parallel",),
                vmem_limit_bytes=_FUSED_VMEM_LIMIT),
        )(w32, x3)
        return out.reshape(B, C, H, W)

    # ---- two-pass streaming path --------------------------------------------
    itemsize = jnp.dtype(x.dtype).itemsize
    TC, THW = _pick_tiles(C, HW, itemsize)
    n_c = pl.cdiv(C, TC)
    n_hw = pl.cdiv(HW, THW)

    # Megacore-friendly split of the HW axis when the parallel extent would be 1.
    if B * n_c >= 2 or n_hw < 2 or (n_hw % 2) != 0:
        n_o, n_i = 1, n_hw
    else:
        n_o, n_i = 2, n_hw // 2

    # pass 1: per-channel spatial partial sums
    psum = pl.pallas_call(
        _make_pool_kernel(HW, THW, n_i),
        out_shape=jax.ShapeDtypeStruct((B, n_o, C, 1), jnp.float32),
        grid_spec=pltpu.PrefetchScalarGridSpec(
            num_scalar_prefetch=0,
            grid=(B, n_c, n_o, n_i),
            in_specs=[pl.BlockSpec((1, TC, THW),
                                   lambda b, c, o, h: (b, c, o * n_i + h))],
            out_specs=pl.BlockSpec((1, 1, TC, 1),
                                   lambda b, c, o, h: (b, o, c, 0)),
        ),
        compiler_params=pltpu.CompilerParams(
            dimension_semantics=("parallel", "parallel", "parallel", "arbitrary"),
            vmem_limit_bytes=_TWO_PASS_VMEM_LIMIT),
    )(x3)

    # tiny conv1d + sigmoid on the pooled (B, C) vector (O(B*C*K), plain JAX)
    pooled = jnp.sum(psum[..., 0], axis=1) * (1.0 / float(HW))   # (B, C)
    p_pad = jnp.pad(pooled, ((0, 0), (pad, pad)))
    y = sum(w32[t] * p_pad[:, t:t + C] for t in range(K))
    scale = jax.nn.sigmoid(y)[:, :, None]                        # (B, C, 1) f32

    # pass 2: streaming channel rescale, written straight to unpadded (B, C, HW)
    out = pl.pallas_call(
        _scale_kernel,
        out_shape=jax.ShapeDtypeStruct((B, C, HW), x.dtype),
        grid_spec=pltpu.PrefetchScalarGridSpec(
            num_scalar_prefetch=0,
            grid=(B, n_c, n_hw),
            in_specs=[
                pl.BlockSpec((1, TC, 1), lambda b, c, h: (b, c, 0)),    # scale (f32)
                pl.BlockSpec((1, TC, THW), lambda b, c, h: (b, c, h)),  # x
            ],
            out_specs=pl.BlockSpec((1, TC, THW), lambda b, c, h: (b, c, h)),
        ),
        compiler_params=pltpu.CompilerParams(
            dimension_semantics=("parallel", "parallel", "parallel"),
            vmem_limit_bytes=_TWO_PASS_VMEM_LIMIT),
    )(scale, x3)
    return out.reshape(B, C, H, W)


def eca_reference(x, weight):
    """Pure-JAX reference matching the PyTorch module."""
    B, C, H, W = x.shape
    K = weight.shape[0]
    pad = K // 2
    p = jnp.mean(x, axis=(2, 3))                                  # (B, C)
    p_pad = jnp.pad(p, ((0, 0), (pad, pad)))
    y = sum(weight[t] * p_pad[:, t:t + C] for t in range(K))      # (B, C)
    scale = jax.nn.sigmoid(y)
    return x * scale[:, :, None, None]


if __name__ == "__main__":
    # Module hyper-params (mirrors ECA.__init__)
    B, C, H, W = 2, 16, 16, 16
    gamma, b = 2, 1
    k = int(abs((math.log(C, 2) + b) / gamma))
    kernel_size = k if k % 2 else k + 1            # C=16 -> kernel_size=3
    fan_in = 1 * kernel_size                       # Conv1d(1, 1, k, bias=False)

    key = jax.random.PRNGKey(0)
    kx, kw, kx2, kx3 = jax.random.split(key, 4)
    x = jax.random.normal(kx, (B, C, H, W), dtype=jnp.float32)
    bound = 1.0 / math.sqrt(fan_in)                # PyTorch default conv init range
    weight = jax.random.uniform(kw, (kernel_size,), jnp.float32, -bound, bound)

    # fused single-pass path (small per-batch slice)
    out = jax.block_until_ready(eca_forward(x, weight))
    ref = eca_reference(x, weight)
    assert out.shape == x.shape and out.dtype == x.dtype
    assert jnp.allclose(out, ref, atol=1e-5, rtol=1e-5), "mismatch vs reference (fused)"

    # ragged spatial size (7x7 -> HW=49), still fused: exercises non-128 HW handling
    x2 = jax.random.normal(kx2, (B, C, 7, 7), dtype=jnp.float32)
    out2 = jax.block_until_ready(eca_forward(x2, weight))
    ref2 = eca_reference(x2, weight)
    assert jnp.allclose(out2, ref2, atol=1e-5, rtol=1e-5), "mismatch vs reference (7x7)"

    # forced two-pass streaming path: multi HW tiles, partial last tile masking,
    # and the megacore outer/inner HW split (B*n_c == 1, even tile count).
    x3_in = jax.random.normal(kx3, (1, C, 192, 192), dtype=jnp.float32)
    out3 = jax.block_until_ready(eca_forward(x3_in, weight, force_two_pass=True))
    ref3 = eca_reference(x3_in, weight)
    assert jnp.allclose(out3, ref3, atol=1e-5, rtol=1e-5), "mismatch vs reference (2-pass)"

    print("KERNEL_OK")
</pallas_src>

<mosaic_0001>
module attributes {stable_mosaic.version = 11 : i64} {
  func.func @kernel(%arg0: i32, %arg1: memref<3xf32, #tpu.memory_space<smem>>, %arg2: memref<1x16x256xf32, #tpu.memory_space<vmem>>, %arg3: memref<1x16x256xf32, #tpu.memory_space<vmem>>, %arg4: memref<24x1xf32, #tpu.memory_space<vmem>>) attributes {dimension_semantics = [#tpu.dimension_semantics<parallel>], iteration_bounds = array<i64: 2>, scalar_prefetch = 0 : i64, scratch_operands = 1 : i64, tpu.core_type = #tpu.core_type<tc>, window_params = [{transform_indices = @transform_0, window_bounds = array<i64: 3>}, {transform_indices = @transform_1, window_bounds = array<i64: 1, 16, 256>}, {transform_indices = @transform_2, window_bounds = array<i64: 1, 16, 256>}]} {
    %c0 = arith.constant 0 : index
    %c0_0 = arith.constant 0 : index
    %c0_1 = arith.constant 0 : index
    %0 = vector.load %arg2[%c0, %c0_0, %c0_1] : memref<1x16x256xf32, #tpu.memory_space<vmem>>, vector<1x16x256xf32>
    %1 = vector.shape_cast %0 : vector<1x16x256xf32> to vector<16x256xf32>
    %cst = arith.constant dense<0.000000e+00> : vector<16xf32>
    %2 = vector.multi_reduction <add>, %1, %cst [1] : vector<16x256xf32> to vector<16xf32>
    %3 = vector.shape_cast %2 : vector<16xf32> to vector<16x1xf32>
    %cst_2 = arith.constant 3.906250e-03 : f32
    %4 = vector.broadcast %cst_2 : f32 to vector<16x1xf32>
    %5 = arith.mulf %3, %4 : vector<16x1xf32>
    %cst_3 = arith.constant 0.000000e+00 : f32
    %6 = vector.broadcast %cst_3 : f32 to vector<24x1xf32>
    %c0_4 = arith.constant 0 : index
    %c0_5 = arith.constant 0 : index
    %7 = vector.load %arg4[%c0_4, %c0_5] : memref<24x1xf32, #tpu.memory_space<vmem>>, vector<24x1xf32>
    tpu.vector_store %arg4[%c0_4, %c0_5], %6 {strides = array<i32>} : memref<24x1xf32, #tpu.memory_space<vmem>>, vector<24x1xf32>,
    %c1 = arith.constant 1 : index
    %c0_6 = arith.constant 0 : index
    %8 = vector.load %arg4[%c1, %c0_6] : memref<24x1xf32, #tpu.memory_space<vmem>>, vector<16x1xf32>
    tpu.vector_store %arg4[%c1, %c0_6], %5 {strides = array<i32>} : memref<24x1xf32, #tpu.memory_space<vmem>>, vector<16x1xf32>,
    %c0_7 = arith.constant 0 : index
    %9 = memref.load %arg1[%c0_7] : memref<3xf32, #tpu.memory_space<smem>>
    %c0_8 = arith.constant 0 : index
    %c0_9 = arith.constant 0 : index
    %10 = vector.load %arg4[%c0_8, %c0_9] : memref<24x1xf32, #tpu.memory_space<vmem>>, vector<16x1xf32>
    %11 = vector.broadcast %9 : f32 to vector<16x1xf32>
    %12 = arith.mulf %11, %10 : vector<16x1xf32>
    %c1_10 = arith.constant 1 : index
    %13 = memref.load %arg1[%c1_10] : memref<3xf32, #tpu.memory_space<smem>>
    %c1_11 = arith.constant 1 : index
    %c0_12 = arith.constant 0 : index
    %14 = vector.load %arg4[%c1_11, %c0_12] : memref<24x1xf32, #tpu.memory_space<vmem>>, vector<16x1xf32>
    %15 = vector.broadcast %13 : f32 to vector<16x1xf32>
    %16 = arith.mulf %15, %14 : vector<16x1xf32>
    %17 = arith.addf %12, %16 : vector<16x1xf32>
    %c2 = arith.constant 2 : index
    %18 = memref.load %arg1[%c2] : memref<3xf32, #tpu.memory_space<smem>>
    %c2_13 = arith.constant 2 : index
    %c0_14 = arith.constant 0 : index
    %19 = vector.load %arg4[%c2_13, %c0_14] : memref<24x1xf32, #tpu.memory_space<vmem>>, vector<16x1xf32>
    %20 = vector.broadcast %18 : f32 to vector<16x1xf32>
    %21 = arith.mulf %20, %19 : vector<16x1xf32>
    %22 = arith.addf %17, %21 : vector<16x1xf32>
    %cst_15 = arith.constant 0.000000e+00 : f32
    %23 = vector.broadcast %cst_15 : f32 to vector<16x1xf32>
    %24 = arith.subf %23, %22 : vector<16x1xf32>
    %25 = math.exp %24 : vector<16x1xf32>
    %cst_16 = arith.constant 1.000000e+00 : f32
    %26 = vector.broadcast %cst_16 : f32 to vector<16x1xf32>
    %27 = arith.addf %26, %25 : vector<16x1xf32>
    %cst_17 = arith.constant 1.000000e+00 : f32
    %28 = vector.broadcast %cst_17 : f32 to vector<16x1xf32>
    %29 = arith.divf %28, %27 : vector<16x1xf32>
    %30 = vector.broadcast %29 : vector<16x1xf32> to vector<16x256xf32>
    %31 = arith.mulf %1, %30 : vector<16x256xf32>
    %c0_18 = arith.constant 0 : index
    %c0_19 = arith.constant 0 : index
    %c0_20 = arith.constant 0 : index
    %32 = vector.load %arg3[%c0_18, %c0_19, %c0_20] : memref<1x16x256xf32, #tpu.memory_space<vmem>>, vector<1x16x256xf32>
    %33 = vector.shape_cast %32 : vector<1x16x256xf32> to vector<16x256xf32>
    %34 = vector.shape_cast %31 : vector<16x256xf32> to vector<1x16x256xf32>
    tpu.vector_store %arg3[%c0_18, %c0_19, %c0_20], %34 {strides = array<i32>} : memref<1x16x256xf32, #tpu.memory_space<vmem>>, vector<1x16x256xf32>,
    return
  }
  func.func @transform_0(%arg0: i32) -> i32 {
    %c0_i32 = arith.constant 0 : i32
    %c0_i32_0 = arith.constant 0 : i32
    return %c0_i32 : i32
  }
  func.func @transform_1(%arg0: i32) -> (i32, i32, i32) {
    %c0_i32 = arith.constant 0 : i32
    %c0_i32_0 = arith.constant 0 : i32
    %c0_i32_1 = arith.constant 0 : i32
    return %arg0, %c0_i32, %c0_i32_0 : i32, i32, i32
  }
  func.func @transform_2(%arg0: i32) -> (i32, i32, i32) {
    %c0_i32 = arith.constant 0 : i32
    %c0_i32_0 = arith.constant 0 : i32
    %c0_i32_1 = arith.constant 0 : i32
    return %arg0, %c0_i32, %c0_i32_0 : i32, i32, i32
  }
}

</mosaic_0001>

<llo_original>
// kernel: tpu_custom_call.1
$region0: #{tpu_custom_call.1}
  #allocation0 [shape = 'u32[]', space=smem, size = 0x4, offset = 0x4, fixed_abs, tag = 'smem constant byte address 0x4 - core index']
  #allocation1 [shape = 'u32[72,128]{1,0:T(1,128)}', space=vmem, size = 0x9000, scoped, tag = 'internal scratch']
  #allocation2 [shape = 'f32[24,1]{1,0:T(8,128)}', space=vmem, size = 0x3000, scoped, tag = 'scratch operand']
  %s0 = inlined_call_operand.hbm [shape: f32[3], index: 0, kind: input, shape index: {}]
  %s1 = inlined_call_operand.hbm [shape: f32[2,16,256], index: 1, kind: input, shape index: {}]
  %s2 = inlined_call_operand.hbm [shape: f32[2,16,256], index: 2, kind: output, shape index: {}]
  %s3 = sld [smem:[#allocation0]]
  $region49: #{tpu_custom_call.1} parent=0
    _
  %s5 = ssub.s32 1, %s3
  %s6 = scalar_select 0, %s5, %s3
  $region1: #{tpu_custom_call.1} parent=0
    #allocation3 [shape = 'u8[512]{0}', space=smem, size = 0x200, scoped, tag = 'input window, operand 0, single buffered']
    #allocation4 [shape = 's32[2]{0}', space=sflag, size = 0x8, scoped, tag = 'scoped memory for tpu_custom_call.1']
    #allocation5 [shape = 's32[2]{0}', space=sflag, size = 0x8, scoped, tag = 'scoped memory for tpu_custom_call.1']
    #allocation6 [shape = 's32[2]{0}', space=sflag, size = 0x8, scoped, tag = 'scoped memory for tpu_custom_call.1']
    #allocation7 [shape = 'u8[32768]{0}', space=vmem, size = 0x8000, scoped, tag = 'input window, operand 1']
    #allocation8 [shape = 'u8[32768]{0}', space=vmem, size = 0x8000, scoped, tag = 'output window, operand 0']
    %7 = vsyncpa [#allocation6], 0
    %8 = vsyncpa [#allocation4], 0
    %s9 = scalar_lea.sflag [#allocation4], 1
    %10 = vsyncpa %s9, 0
    %11 = vsyncpa [#allocation5], 0
    %s12 = scalar_lea.sflag [#allocation5], 1
    %13 = vsyncpa %s12, 0
    loop: start=0, step=1, limit=4
    $region2: #{tpu_custom_call.1} parent=1 // loop_pre_header
      _
    $region3: #{tpu_custom_call.1} parent=1 // loop_header
      %s15 = sphi 0, %s19
      %p16 = scmp.ge.s32.totalorder %s15, 4
      %s23 = sphi 0, %s23
      %s25 = sphi 0, %s23
      %s26 = sphi 0, %s25
      %s40 = sphi 0, %s26
      %s46 = sphi 0, %s48
      %s49 = sphi 0, %s46
      %s50 = sphi 0, %s49
      %s66 = sphi 0, %s50
      %s72 = sphi 0, %s74
      %s75 = sphi 0, %s72
      %s76 = sphi 0, %s75
      %s92 = sphi 0, %s76
    $region4: #{tpu_custom_call.1} parent=1 // loop_header_branch
      %18 = sbr.rel (%p16) target = $region8
    $region5: #{tpu_custom_call.1} parent=1 // loop_body
      %s20 = ssub.s32 %s15, 1
      %s21 = ssub.s32 %s15, 2
      %s22 = sadd.s32 %s15, 1
      %s24 = sadd.s32 %s23, 1
      %p27 = scmp.eq.s32.totalorder %s15, 1
      %p28 = scmp.ne.s32.totalorder %s23, %s25
      %p29 = scmp.eq.s32.totalorder %s15, 0
      %p30 = por %p28, %p29
      %p31 = scmp.ne.s32.totalorder %s23, %s25
      %p32 = scmp.eq.s32.totalorder %s20, 1
      %p33 = por %p31, %p32
      %p34 = scmp.ne.s32.totalorder %s25, %s26
      %p35 = scmp.eq.s32.totalorder %s20, 0
      %p36 = por %p34, %p35
      %p37 = scmp.ne.s32.totalorder %s25, %s26
      %p38 = scmp.eq.s32.totalorder %s21, 1
      %p39 = por %p37, %p38
      %p41 = scmp.ne.s32.totalorder %s26, %s40
      %p42 = scmp.eq.s32.totalorder %s21, 0
      %p43 = por %p41, %p42
      %s44 = ssub.s32 %s15, %s22
      %p45 = scmp.eq.s32.totalorder %s44, 0
      %s47 = sadd.s32 %s46, 1
      %s48 = scalar_select %p45, %s46, %s47
      %p51 = pneg %p45
      %p52 = scmp.eq.s32.totalorder %s15, 1
      %p53 = por %p51, %p52
      %p54 = scmp.ne.s32.totalorder %s46, %s49
      %p55 = scmp.eq.s32.totalorder %s15, 0
      %p56 = por %p54, %p55
      %p57 = scmp.ne.s32.totalorder %s46, %s49
      %p58 = scmp.eq.s32.totalorder %s20, 1
      %p59 = por %p57, %p58
      %p60 = scmp.ne.s32.totalorder %s49, %s50
      %p61 = scmp.eq.s32.totalorder %s20, 0
      %p62 = por %p60, %p61
      %p63 = scmp.ne.s32.totalorder %s49, %s50
      %p64 = scmp.eq.s32.totalorder %s21, 1
      %p65 = por %p63, %p64
      %p67 = scmp.ne.s32.totalorder %s50, %s66
      %p68 = scmp.eq.s32.totalorder %s21, 0
      %p69 = por %p67, %p68
      %s70 = ssub.s32 %s15, %s22
      %p71 = scmp.eq.s32.totalorder %s70, 0
      %s73 = sadd.s32 %s72, 1
      %s74 = scalar_select %p71, %s72, %s73
      %p77 = pneg %p71
      %p78 = scmp.eq.s32.totalorder %s15, 1
      %p79 = por %p77, %p78
      %p80 = scmp.ne.s32.totalorder %s72, %s75
      %p81 = scmp.eq.s32.totalorder %s15, 0
      %p82 = por %p80, %p81
      %p83 = scmp.ne.s32.totalorder %s72, %s75
      %p84 = scmp.eq.s32.totalorder %s20, 1
      %p85 = por %p83, %p84
      %p86 = scmp.ne.s32.totalorder %s75, %s76
      %p87 = scmp.eq.s32.totalorder %s20, 0
      %p88 = por %p86, %p87
      %p89 = scmp.ne.s32.totalorder %s75, %s76
      %p90 = scmp.eq.s32.totalorder %s21, 1
      %p91 = por %p89, %p90
      %p93 = scmp.ne.s32.totalorder %s76, %s92
      %p94 = scmp.eq.s32.totalorder %s21, 0
      %p95 = por %p93, %p94
      %p96 = scmp.le.s32.totalorder 1, %s15
      %p97 = scmp.lt.s32.totalorder %s15, 3
      %p98 = pnand %p96, %p97
      %p99 = pneg %p98
      // Predicated region
      $region9: #{tpu_custom_call.1} parent=5 // pred_check
        _
      $region10: #{tpu_custom_call.1} parent=5 // pred_check_branch
        %101 = sbr.rel (%p98) target = $region12
      $region11: #{tpu_custom_call.1} parent=5 // pred_region
        %s102 = ssub.s32 %s15, 1
        // Predicated region
        $region13: #{tpu_custom_call.1} parent=11 // pred_check
          %p103 = pneg %p36
        $region14: #{tpu_custom_call.1} parent=11 // pred_check_branch
          %105 = sbr.rel (%p103) target = $region16
        $region15: #{tpu_custom_call.1} parent=11 // pred_region
          %107 = vsyncadd [#allocation6], 0
          %s109 = sshll.u32 %s0, 4
          %s110 = int_to_ptr.hbm [resolvable:$true] %s109
          %112 = dma.hbm_to_smem %s110, 16, [#allocation3], [#allocation6]
        $region16: #{tpu_custom_call.1} parent=11 // pred_fallthru
          _
      $region12: #{tpu_custom_call.1} parent=5 // pred_fallthru
        _
      %p113 = scmp.lt.s32.totalorder %s15, 2
      // Predicated region
      $region17: #{tpu_custom_call.1} parent=5 // pred_check
        %p114 = pneg %p113
      $region18: #{tpu_custom_call.1} parent=5 // pred_check_branch
        %116 = sbr.rel (%p114) target = $region20
      $region19: #{tpu_custom_call.1} parent=5 // pred_region
        // Predicated region
        $region21: #{tpu_custom_call.1} parent=19 // pred_check
          %p117 = pneg %p56
        $region22: #{tpu_custom_call.1} parent=19 // pred_check_branch
          %119 = sbr.rel (%p117) target = $region24
        $region23: #{tpu_custom_call.1} parent=19 // pred_region
          %s120 = sand.u32 %s46, 1
          %s121 = scalar_lea.sflag [#allocation4], %s120
          %s122 = sand.u32 %s46, 1
          %s123 = smul.addr %s122, 32
          %s124 = scalar_lea.vmem [#allocation7], %s123
          %126 = vsyncadd %s121, 0
          %s127 = smul.addr %s15, 4
          %s128 = smul.addr %s127, 8
          %s129 = scalar_lea.hbm %s1, %s128
          %s130 = sshll.u32 %s129, 4
          %s131 = int_to_ptr.hbm [resolvable:$true] %s130
          %s132 = sshll.u32 %s124, 4
          %s133 = int_to_ptr.vmem [resolvable:$true] %s132
          %138 = dma.hbm_to_vmem [thread:$0]  %s131, 512, %s133, %s121, 256, 256, 16
        $region24: #{tpu_custom_call.1} parent=19 // pred_fallthru
          _
      $region20: #{tpu_custom_call.1} parent=5 // pred_fallthru
        _
      %p139 = scmp.le.s32.totalorder 1, %s15
      %p140 = scmp.lt.s32.totalorder %s15, 3
      %p141 = pnand %p139, %p140
      %p142 = pneg %p141
      // Predicated region
      $region25: #{tpu_custom_call.1} parent=5 // pred_check
        _
      $region26: #{tpu_custom_call.1} parent=5 // pred_check_branch
        %144 = sbr.rel (%p141) target = $region28
      $region27: #{tpu_custom_call.1} parent=5 // pred_region
        %s145 = ssub.s32 %s15, 1
        // Predicated region
        $region29: #{tpu_custom_call.1} parent=27 // pred_check
          %p146 = pneg %p36
        $region30: #{tpu_custom_call.1} parent=27 // pred_check_branch
          %148 = sbr.rel (%p146) target = $region32
        $region31: #{tpu_custom_call.1} parent=27 // pred_region
          %150 = dma.done [#allocation6], 16
        $region32: #{tpu_custom_call.1} parent=27 // pred_fallthru
          _
        %s151 = sand.u32 %s49, 1
        %s152 = scalar_lea.sflag [#allocation4], %s151
        %s153 = sand.u32 %s49, 1
        %s154 = smul.addr %s153, 32
        %s155 = scalar_lea.vmem [#allocation7], %s154
        // Predicated region
        $region33: #{tpu_custom_call.1} parent=27 // pred_check
          %p156 = pneg %p62
        $region34: #{tpu_custom_call.1} parent=27 // pred_check_branch
          %158 = sbr.rel (%p156) target = $region36
        $region35: #{tpu_custom_call.1} parent=27 // pred_region
          %160 = dma.done %s152, 512
        $region36: #{tpu_custom_call.1} parent=27 // pred_fallthru
          _
        %161 = sfence
        %p162 = pneg %p36
        %p163 = pneg %p33
        %s164 = sand.u32 %s49, 1
        %s165 = scalar_lea.sflag [#allocation4], %s164
        %s166 = sand.u32 %s49, 1
        %s167 = smul.addr %s166, 32
        %s168 = scalar_lea.vmem [#allocation7], %s167
        %p169 = pneg %p62
        %p170 = pneg %p59
        %p171 = pneg %p88
        %p172 = pneg %p85
        %s173 = sand.u32 %s75, 1
        %s174 = scalar_lea.sflag [#allocation5], %s173
        %s175 = sand.u32 %s75, 1
        %s176 = smul.addr %s175, 32
        %s177 = scalar_lea.vmem [#allocation8], %s176
        %v178 = vld [vmem:[%s155] sm:$0xff]
        %v179 = vld [vmem:[%s155 + $0x8] sm:$0xff]
        %v180 = vld [vmem:[%s155 + $0x10] sm:$0xff]
        %v181 = vld [vmem:[%s155 + $0x18] sm:$0xff]
        %v182 = vadd.f32 %v178, %v179
        %183 = vadd.xlane.f32.xlu0 %v182
        %v184 = vpop.xlane.xlu0 %183
        %v185 = vadd.f32 %v180, %v181
        %186 = vadd.xlane.f32.xlu0 %v185
        %v187 = vpop.xlane.xlu0 %186
        %v188 = vmul.f32 %v184, 0.00390625
        %v189 = vmul.f32 %v187, 0.00390625
        %vm190 = vcmask 7168
        %191 = vst.msk [vmem:[#allocation2] sm:$0xff] %vm190, 0.0
        %192 = vst.msk [vmem:[#allocation2 + $0x8] sm:$0xff] %vm190, 0.0
        %193 = vst.msk [vmem:[#allocation2 + $0x10] sm:$0xff] %vm190, 0.0
        %194 = vst.msk [vmem:[#allocation2 + $0x1] sm:$0xff] %vm190, %v188
        %195 = vst.msk [vmem:[#allocation2 + $0x9] sm:$0xff] %vm190, %v189
        %s196 = sld [smem:[#allocation3]]
        %v197 = vld [vmem:[#allocation2] sm:$0xff]
        %v198 = vld [vmem:[#allocation2 + $0x8] sm:$0xff]
        %v199 = vstv %s196
        %v200 = vmul.f32 %v199, %v197
        %v201 = vmul.f32 %v199, %v198
        %s202 = sld [smem:[#allocation3 + $0x1]]
        %v203 = vld [vmem:[#allocation2 + $0x1] sm:$0xff]
        %v204 = vld [vmem:[#allocation2 + $0x9] sm:$0xff]
        %v205 = vstv %s202
        %v206 = vmul.f32 %v205, %v203
        %v207 = vmul.f32 %v205, %v204
        %v208 = vadd.f32 %v200, %v206
        %v209 = vadd.f32 %v201, %v207
        %s210 = sld [smem:[#allocation3 + $0x2]]
        %v211 = vld [vmem:[#allocation2 + $0x2] sm:$0xff]
        %v212 = vld [vmem:[#allocation2 + $0xa] sm:$0xff]
        %v213 = vstv %s210
        %v214 = vmul.f32 %v213, %v211
        %v215 = vmul.f32 %v213, %v212
        %v216 = vadd.f32 %v208, %v214
        %v217 = vadd.f32 %v209, %v215
        %v218 = vsub.f32 0.0, %v216
        %v219 = vsub.f32 0.0, %v217
        %v220 = vmul.f32 %v218, 1.442695
        %v221 = vpow.pop %v220
        %v222 = vmul.f32 %v219, 1.442695
        %v223 = vpow.pop %v222
        %v224 = vadd.f32 %v221, 1.0
        %v225 = vadd.f32 %v223, 1.0
        %v226 = vrcp.pop %v224
        %v227 = vmul.f32 %v224, %v226
        %v228 = vsub.f32 1.0, %v227
        %v229 = vmul.f32 %v226, %v228
        %v230 = vadd.f32 %v226, %v229
        %vm231 = vweird.f32 %v224
        %vm232 = vweird.f32 %v226
        %vm233 = vmor %vm231, %vm232
        %v234 = vsel %vm233, %v226, %v230
        %v235 = vand.u32 2147483647, %v224
        %vm236 = vcmp.eq.f32.partialorder %v235, 8.507059e+37
        %v237 = vand.u32 %v224, 2147483648
        %v238 = vor.u32 1.1754944e-38, %v237
        %v239 = vsel %vm236, %v238, %v234
        %v240 = vmul.f32 1.0, %v239
        %v241 = vrcp.pop %v225
        %v242 = vmul.f32 %v225, %v241
        %v243 = vsub.f32 1.0, %v242
        %v244 = vmul.f32 %v241, %v243
        %v245 = vadd.f32 %v241, %v244
        %vm246 = vweird.f32 %v225
        %vm247 = vweird.f32 %v241
        %vm248 = vmor %vm246, %vm247
        %v249 = vsel %vm248, %v241, %v245
        %v250 = vand.u32 2147483647, %v225
        %vm251 = vcmp.eq.f32.partialorder %v250, 8.507059e+37
        %v252 = vand.u32 %v225, 2147483648
        %v253 = vor.u32 1.1754944e-38, %v252
        %v254 = vsel %vm251, %v253, %v249
        %v255 = vmul.f32 1.0, %v254
        %257 = vset.pattern.permute.xlu0 0
        %258 = vperm.xlu0 %257, %v240
        %v259 = vpop.permute.xlu0 %258
        %262 = vset.pattern.permute.xlu0 0
        %263 = vperm.xlu0 %262, %v255
        %v264 = vpop.permute.xlu0 %263
        %v266 = vmul.f32 %v178, %v259
        %v267 = vmul.f32 %v179, %v259
        %v268 = vmul.f32 %v180, %v264
        %v269 = vmul.f32 %v181, %v264
        %270 = vst [vmem:[%s177] sm:$0xff] %v266
        %271 = vst [vmem:[%s177 + $0x8] sm:$0xff] %v267
        %272 = vst [vmem:[%s177 + $0x10] sm:$0xff] %v268
        %273 = vst [vmem:[%s177 + $0x18] sm:$0xff] %v269
        %s274 = sand.u32 %s75, 1
        %s275 = scalar_lea.sflag [#allocation5], %s274
        %s276 = sand.u32 %s75, 1
        %s277 = smul.addr %s276, 32
        %s278 = scalar_lea.vmem [#allocation8], %s277
        // Predicated region
        $region37: #{tpu_custom_call.1} parent=27 // pred_check
          %p279 = pneg %p85
        $region38: #{tpu_custom_call.1} parent=27 // pred_check_branch
          %281 = sbr.rel (%p279) target = $region40
        $region39: #{tpu_custom_call.1} parent=27 // pred_region
          %283 = vsyncadd %s275, 0
          %s284 = smul.addr %s20, 4
          %s285 = smul.addr %s284, 8
          %s286 = scalar_lea.hbm %s2, %s285
          %s287 = sshll.u32 %s278, 4
          %s288 = int_to_ptr.vmem [resolvable:$true] %s287
          %s289 = sshll.u32 %s286, 4
          %s290 = int_to_ptr.hbm [resolvable:$true] %s289
          %295 = dma.vmem_to_hbm [thread:$0]  %s288, 512, %s290, %s275, 256, 256, 16
        $region40: #{tpu_custom_call.1} parent=27 // pred_fallthru
          _
      $region28: #{tpu_custom_call.1} parent=5 // pred_fallthru
        _
      %p296 = scmp.le.s32.totalorder 2, %s15
      // Predicated region
      $region41: #{tpu_custom_call.1} parent=5 // pred_check
        %p297 = pneg %p296
      $region42: #{tpu_custom_call.1} parent=5 // pred_check_branch
        %299 = sbr.rel (%p297) target = $region44
      $region43: #{tpu_custom_call.1} parent=5 // pred_region
        %s300 = ssub.s32 %s15, 2
        // Predicated region
        $region45: #{tpu_custom_call.1} parent=43 // pred_check
          %p301 = pneg %p91
        $region46: #{tpu_custom_call.1} parent=43 // pred_check_branch
          %303 = sbr.rel (%p301) target = $region48
        $region47: #{tpu_custom_call.1} parent=43 // pred_region
          %s304 = sand.u32 %s76, 1
          %s305 = scalar_lea.sflag [#allocation5], %s304
          %s306 = sand.u32 %s76, 1
          %s307 = smul.addr %s306, 32
          %s308 = scalar_lea.vmem [#allocation8], %s307
          %310 = dma.done %s305, 512
        $region48: #{tpu_custom_call.1} parent=43 // pred_fallthru
          _
      $region44: #{tpu_custom_call.1} parent=5 // pred_fallthru
        _
    $region6: #{tpu_custom_call.1} parent=1 // loop_footer
      %s19 = sadd.s32 1, %s15
    $region7: #{tpu_custom_call.1} parent=1 // loop_footer_branch
      %14 = sbr.rel target = $region3
    $region8: #{tpu_custom_call.1} parent=1 // loop_exit
      _
    %311 = vsyncpa [#allocation4], 1
    %s312 = scalar_lea.sflag [#allocation4], 1
    %313 = vsyncpa %s312, 1
    %314 = vsyncpa [#allocation5], 1
    %s315 = scalar_lea.sflag [#allocation5], 1
    %316 = vsyncpa %s315, 1
    %317 = vsyncpa [#allocation6], 1
    %s318 = scalar_lea.sflag [#allocation6], 1
    %319 = vsyncpa %s318, 1

</llo_original>
